<compile_context>
chip_gen: v5e
topology: v5e:2x2
jax: 0.10.0
libtpu: 0.0.40
codegen_flags: <defaults>
</compile_context>

<pallas_src>
import math

import jax
import jax.numpy as jnp
from jax.experimental import pallas as pl
from jax.experimental.pallas import tpu as pltpu


def make_positional_encoding(max_len: int = 143, d_model: int = 250,
                             dtype=jnp.float32):
    """Deterministic sin/cos buffer, identical to the PyTorch __init__.

    Built once in the model dtype so the forward pass never re-casts it.
    Returns shape (max_len, 1, d_model), matching the registered buffer.
    """
    position = jnp.arange(0, max_len, dtype=jnp.float32)[:, None]      # (max_len, 1)
    div_term = jnp.exp(
        jnp.arange(0, d_model, 2, dtype=jnp.float32)
        * (-math.log(10000.0) / d_model)
    )                                                                  # (d_model/2,)
    pe = jnp.zeros((max_len, d_model), dtype=jnp.float32)
    pe = pe.at[:, 0::2].set(jnp.sin(position * div_term))
    pe = pe.at[:, 1::2].set(jnp.cos(position * div_term))
    # unsqueeze(0).transpose(0, 1)  ->  (max_len, 1, d_model)
    return pe[:, None, :].astype(dtype)


def _pos_enc_kernel(x_ref, pe_ref, o_ref):
    # x_ref / o_ref: (tS, tB, D) VMEM tiles; pe_ref: (tS, D) VMEM tile.
    # Broadcast pe over the batch (sublane) axis on the VPU.  Keep this
    # broadcast in-kernel: the kernel is HBM-bound, so the sublane replication
    # is hidden, while pre-broadcasting pe in the wrapper would cost real
    # HBM bandwidth.
    o_ref[...] = x_ref[...] + pe_ref[...][:, None, :]


def _choose_tiles(S, B, D, itemsize, target_tile_bytes=4 * 1024 * 1024):
    """Pick (tS, tB) so blocks are layout-legal, dense, and ~target bytes.

    Constraints (last two dims of each block must be (8,128)-divisible or the
    full array dim):
      * x/out block (tS, tB, D):  tB % 8 == 0 or tB == B;  D is full.
      * pe  block   (tS, D)    :  tS % 8 == 0 or tS == S;  D is full.
    """
    # Sublane granularity for dense packing: 8 rows of 32-bit, 16 for bf16,
    # 32 for int8/fp8 (all are multiples of 8, so always layout-legal).
    sub = max(8, 32 // max(1, itemsize))

    def round_dn(v, m):
        return max(m, (v // m) * m)

    # ---- batch tile: grow it first (dense sublanes, fewer grid steps) ----
    if B % sub != 0:
        tB = B                                       # full batch (edge-legal)
    else:
        # Cap tB so a minimal-height (sub rows) tile still fits the target,
        # leaving room for tS >= sub below.
        cap = max(sub, target_tile_bytes // max(1, sub * D * itemsize))
        tB = min(B, round_dn(cap, sub))

    # ---- seq tile: fill up to ~target_tile_bytes per x tile ----
    row_bytes = max(1, tB * D * itemsize)
    want = target_tile_bytes // row_bytes
    if want >= S or S <= sub:
        tS = S                                       # full seq (edge-legal)
    else:
        tS = min(round_dn(int(want), sub), round_dn(S, sub))

    # ---- keep >= 2 grid steps so the software pipeline (prefetch of i+1 /
    # writeback of i-1) and v7x megacore sharding stay alive ----
    if pl.cdiv(S, tS) * pl.cdiv(B, tB) == 1 and S >= 2 * sub:
        tS = round_dn(pl.cdiv(S, 2), sub)

    return int(tS), int(tB)


def positional_encoding_forward(x: jax.Array, pe: jax.Array,
                                *, donate_x: bool = False) -> jax.Array:
    """x: (seq_len, batch, d_model); pe: (max_len, 1, d_model) buffer."""
    S, B, D = x.shape
    if S > pe.shape[0]:
        raise ValueError(f"seq_len={S} exceeds max_len={pe.shape[0]}")

    # Static slice + squeeze of the buffer (glue, folded by XLA).  Keep pe
    # 2-D so the kernel sees a clean (tS, D) tile with no size-1 sublane dim.
    pe2d = pe[:S, 0, :]
    if pe2d.dtype != x.dtype:  # normally a no-op: pe is prebuilt in model dtype
        pe2d = pe2d.astype(x.dtype)

    tS, tB = _choose_tiles(S, B, D, jnp.dtype(x.dtype).itemsize)
    grid = (pl.cdiv(S, tS), pl.cdiv(B, tB))  # batch axis is the inner loop

    return pl.pallas_call(
        _pos_enc_kernel,
        out_shape=jax.ShapeDtypeStruct((S, B, D), x.dtype),
        grid=grid,
        in_specs=[
            pl.BlockSpec((tS, tB, D), lambda i, j: (i, j, 0)),
            # pe index_map is constant along the inner batch axis j, so the
            # pe tile is fetched once per seq tile and stays VMEM-resident.
            pl.BlockSpec((tS, D), lambda i, j: (i, 0)),
        ],
        out_specs=pl.BlockSpec((tS, tB, D), lambda i, j: (i, j, 0)),
        # Optional in-place add into x's buffer (caller must be able to
        # donate x); saves the extra (S,B,D) output allocation.
        input_output_aliases=({0: 0} if donate_x else {}),
        compiler_params=pltpu.CompilerParams(
            # Independent elementwise tiles: both axes parallel so a v7x
            # megacore shards the grid across its 2 TensorCores.
            dimension_semantics=("parallel", "parallel"),
            # ~4 MiB tiles x (x + out) x 2 buffers + resident pe ~= 17 MiB:
            # 48 MiB leaves headroom yet stays inside v7x's 64 MiB/TC VMEM
            # (v5e/v6e have 128 MiB physical, so this only raises their
            # small scoped defaults).
            vmem_limit_bytes=48 * 1024 * 1024,
        ),
    )(x, pe2d)


if __name__ == "__main__":
    # Shapes consistent with the module: d_model/max_len are the PyTorch
    # defaults (250 / 143); small seq_len / batch for the smoke test.
    # TODO(synk): if the surrounding transformer runs in bf16, pass bf16
    # x/pe here -- the kernel handles it and _choose_tiles packs sublanes
    # densely (multiple of 16).
    d_model, max_len = 250, 143
    seq_len, batch = 16, 4

    key = jax.random.PRNGKey(0)
    x = jax.random.normal(key, (seq_len, batch, d_model), dtype=jnp.float32)

    pe = make_positional_encoding(max_len, d_model, dtype=x.dtype)

    # Reference check (plain JAX, same math as the PyTorch forward).
    ref = x + pe[:seq_len]

    out = positional_encoding_forward(x, pe)
    out = jax.block_until_ready(out)

    assert out.shape == (seq_len, batch, d_model)
    assert jnp.allclose(out, ref, atol=1e-6, rtol=1e-6)

    print("KERNEL_OK")
</pallas_src>

<mosaic_0001>
module attributes {stable_mosaic.version = 11 : i64} {
  func.func @_pos_enc_kernel(%arg0: i32, %arg1: i32, %arg2: memref<8x4x250xf32, #tpu.memory_space<vmem>>, %arg3: memref<8x250xf32, #tpu.memory_space<vmem>>, %arg4: memref<8x4x250xf32, #tpu.memory_space<vmem>>) attributes {dimension_semantics = [#tpu.dimension_semantics<parallel>, #tpu.dimension_semantics<parallel>], iteration_bounds = array<i64: 2, 1>, scalar_prefetch = 0 : i64, scratch_operands = 0 : i64, tpu.core_type = #tpu.core_type<tc>, window_params = [{transform_indices = @transform_0, window_bounds = array<i64: 8, 4, 250>}, {transform_indices = @transform_1, window_bounds = array<i64: 8, 250>}, {transform_indices = @transform_2, window_bounds = array<i64: 8, 4, 250>}]} {
    %c0 = arith.constant 0 : index
    %c0_0 = arith.constant 0 : index
    %c0_1 = arith.constant 0 : index
    %0 = vector.load %arg2[%c0, %c0_0, %c0_1] : memref<8x4x250xf32, #tpu.memory_space<vmem>>, vector<8x4x250xf32>
    %c0_2 = arith.constant 0 : index
    %c0_3 = arith.constant 0 : index
    %1 = vector.load %arg3[%c0_2, %c0_3] : memref<8x250xf32, #tpu.memory_space<vmem>>, vector<8x250xf32>
    %2 = vector.shape_cast %1 : vector<8x250xf32> to vector<8x1x250xf32>
    %3 = vector.broadcast %2 : vector<8x1x250xf32> to vector<8x4x250xf32>
    %4 = arith.addf %0, %3 : vector<8x4x250xf32>
    %c0_4 = arith.constant 0 : index
    %c0_5 = arith.constant 0 : index
    %c0_6 = arith.constant 0 : index
    %5 = vector.load %arg4[%c0_4, %c0_5, %c0_6] : memref<8x4x250xf32, #tpu.memory_space<vmem>>, vector<8x4x250xf32>
    tpu.vector_store %arg4[%c0_4, %c0_5, %c0_6], %4 {strides = array<i32>} : memref<8x4x250xf32, #tpu.memory_space<vmem>>, vector<8x4x250xf32>,
    return
  }
  func.func @transform_0(%arg0: i32, %arg1: i32) -> (i32, i32, i32) {
    %c0_i32 = arith.constant 0 : i32
    %c0_i32_0 = arith.constant 0 : i32
    return %arg0, %arg1, %c0_i32 : i32, i32, i32
  }
  func.func @transform_1(%arg0: i32, %arg1: i32) -> (i32, i32) {
    %c0_i32 = arith.constant 0 : i32
    %c0_i32_0 = arith.constant 0 : i32
    return %arg0, %c0_i32 : i32, i32
  }
  func.func @transform_2(%arg0: i32, %arg1: i32) -> (i32, i32, i32) {
    %c0_i32 = arith.constant 0 : i32
    %c0_i32_0 = arith.constant 0 : i32
    return %arg0, %arg1, %c0_i32 : i32, i32, i32
  }
}

</mosaic_0001>

<llo_original>
// kernel: tpu_custom_call.1
$region0: #{tpu_custom_call.1}
  #allocation0 [shape = 'u32[]', space=smem, size = 0x4, offset = 0x4, fixed_abs, tag = 'smem constant byte address 0x4 - core index']
  #allocation1 [shape = 'u32[72,128]{1,0:T(1,128)}', space=vmem, size = 0x9000, scoped, tag = 'internal scratch']
  %s0 = inlined_call_operand.hbm [shape: f32[16,4,250], index: 0, kind: input, shape index: {}]
  %s1 = inlined_call_operand.hbm [shape: f32[16,250], index: 1, kind: input, shape index: {}]
  %s2 = inlined_call_operand.hbm [shape: f32[16,4,250], index: 2, kind: output, shape index: {}]
  %s3 = sld [smem:[#allocation0]]
  $region49: #{tpu_custom_call.1} parent=0
    _
  %s5 = ssub.s32 1, %s3
  %s6 = scalar_select 0, %s5, %s3
  $region1: #{tpu_custom_call.1} parent=0
    #allocation2 [shape = 'u8[65536]{0}', space=vmem, size = 0x10000, scoped, tag = 'input window, operand 0']
    #allocation3 [shape = 's32[2]{0}', space=sflag, size = 0x8, scoped, tag = 'scoped memory for tpu_custom_call.1']
    #allocation4 [shape = 's32[2]{0}', space=sflag, size = 0x8, scoped, tag = 'scoped memory for tpu_custom_call.1']
    #allocation5 [shape = 'u8[16384]{0}', space=vmem, size = 0x4000, scoped, tag = 'input window, operand 1']
    #allocation6 [shape = 's32[2]{0}', space=sflag, size = 0x8, scoped, tag = 'scoped memory for tpu_custom_call.1']
    #allocation7 [shape = 'u8[65536]{0}', space=vmem, size = 0x10000, scoped, tag = 'output window, operand 0']
    %7 = vsyncpa [#allocation3], 0
    %s8 = scalar_lea.sflag [#allocation3], 1
    %9 = vsyncpa %s8, 0
    %10 = vsyncpa [#allocation6], 0
    %s11 = scalar_lea.sflag [#allocation6], 1
    %12 = vsyncpa %s11, 0
    %13 = vsyncpa [#allocation4], 0
    %s14 = scalar_lea.sflag [#allocation4], 1
    %15 = vsyncpa %s14, 0
    loop: start=0, step=1, limit=4
    $region2: #{tpu_custom_call.1} parent=1 // loop_pre_header
      _
    $region3: #{tpu_custom_call.1} parent=1 // loop_header
      %s17 = sphi 0, %s21
      %p18 = scmp.ge.s32.totalorder %s17, 4
      %s24 = sphi 0, %s36
      %s25 = sphi 0, %s32
      %s26 = sphi 0, %s24
      %s27 = sphi 0, %s25
      %s28 = sphi 0, %s26
      %s29 = sphi 0, %s27
      %s41 = sphi 0, %s43
      %s44 = sphi 0, %s41
      %s45 = sphi 0, %s44
      %s61 = sphi 0, %s45
      %s67 = sphi 0, %s69
      %s70 = sphi 0, %s67
      %s71 = sphi 0, %s70
      %s87 = sphi 0, %s71
      %s95 = sphi 0, %s97
      %s98 = sphi 0, %s95
      %s99 = sphi 0, %s98
      %s115 = sphi 0, %s99
    $region4: #{tpu_custom_call.1} parent=1 // loop_header_branch
      %20 = sbr.rel (%p18) target = $region8
    $region5: #{tpu_custom_call.1} parent=1 // loop_body
      %s22 = ssub.s32 %s17, 1
      %s23 = ssub.s32 %s17, 2
      %s30 = sadd.s32 1, %s25
      %p31 = scmp.ge.s32.totalorder %s30, 1
      %s32 = scalar_select %p31, 0, %s30
      %s33 = sadd.s32 1, %s24
      %s34 = scalar_select %p31, %s33, %s24
      %p35 = scmp.ge.s32.totalorder %s34, 2
      %s36 = scalar_select %p35, 0, %s34
      %s37 = ssub.s32 %s24, %s36
      %s38 = ssub.s32 %s25, %s32
      %s39 = sor.u32 %s37, %s38
      %p40 = scmp.eq.s32.totalorder %s39, 0
      %s42 = sadd.s32 %s41, 1
      %s43 = scalar_select %p40, %s41, %s42
      %p46 = pneg %p40
      %p47 = scmp.eq.s32.totalorder %s17, 1
      %p48 = por %p46, %p47
      %p49 = scmp.ne.s32.totalorder %s41, %s44
      %p50 = scmp.eq.s32.totalorder %s17, 0
      %p51 = por %p49, %p50
      %p52 = scmp.ne.s32.totalorder %s41, %s44
      %p53 = scmp.eq.s32.totalorder %s22, 1
      %p54 = por %p52, %p53
      %p55 = scmp.ne.s32.totalorder %s44, %s45
      %p56 = scmp.eq.s32.totalorder %s22, 0
      %p57 = por %p55, %p56
      %p58 = scmp.ne.s32.totalorder %s44, %s45
      %p59 = scmp.eq.s32.totalorder %s23, 1
      %p60 = por %p58, %p59
      %p62 = scmp.ne.s32.totalorder %s45, %s61
      %p63 = scmp.eq.s32.totalorder %s23, 0
      %p64 = por %p62, %p63
      %s65 = ssub.s32 %s24, %s36
      %p66 = scmp.eq.s32.totalorder %s65, 0
      %s68 = sadd.s32 %s67, 1
      %s69 = scalar_select %p66, %s67, %s68
      %p72 = pneg %p66
      %p73 = scmp.eq.s32.totalorder %s17, 1
      %p74 = por %p72, %p73
      %p75 = scmp.ne.s32.totalorder %s67, %s70
      %p76 = scmp.eq.s32.totalorder %s17, 0
      %p77 = por %p75, %p76
      %p78 = scmp.ne.s32.totalorder %s67, %s70
      %p79 = scmp.eq.s32.totalorder %s22, 1
      %p80 = por %p78, %p79
      %p81 = scmp.ne.s32.totalorder %s70, %s71
      %p82 = scmp.eq.s32.totalorder %s22, 0
      %p83 = por %p81, %p82
      %p84 = scmp.ne.s32.totalorder %s70, %s71
      %p85 = scmp.eq.s32.totalorder %s23, 1
      %p86 = por %p84, %p85
      %p88 = scmp.ne.s32.totalorder %s71, %s87
      %p89 = scmp.eq.s32.totalorder %s23, 0
      %p90 = por %p88, %p89
      %s91 = ssub.s32 %s24, %s36
      %s92 = ssub.s32 %s25, %s32
      %s93 = sor.u32 %s91, %s92
      %p94 = scmp.eq.s32.totalorder %s93, 0
      %s96 = sadd.s32 %s95, 1
      %s97 = scalar_select %p94, %s95, %s96
      %p100 = pneg %p94
      %p101 = scmp.eq.s32.totalorder %s17, 1
      %p102 = por %p100, %p101
      %p103 = scmp.ne.s32.totalorder %s95, %s98
      %p104 = scmp.eq.s32.totalorder %s17, 0
      %p105 = por %p103, %p104
      %p106 = scmp.ne.s32.totalorder %s95, %s98
      %p107 = scmp.eq.s32.totalorder %s22, 1
      %p108 = por %p106, %p107
      %p109 = scmp.ne.s32.totalorder %s98, %s99
      %p110 = scmp.eq.s32.totalorder %s22, 0
      %p111 = por %p109, %p110
      %p112 = scmp.ne.s32.totalorder %s98, %s99
      %p113 = scmp.eq.s32.totalorder %s23, 1
      %p114 = por %p112, %p113
      %p116 = scmp.ne.s32.totalorder %s99, %s115
      %p117 = scmp.eq.s32.totalorder %s23, 0
      %p118 = por %p116, %p117
      %p119 = scmp.le.s32.totalorder 1, %s17
      %p120 = scmp.lt.s32.totalorder %s17, 3
      %p121 = pnand %p119, %p120
      %p122 = pneg %p121
      // Predicated region
      $region9: #{tpu_custom_call.1} parent=5 // pred_check
        _
      $region10: #{tpu_custom_call.1} parent=5 // pred_check_branch
        %124 = sbr.rel (%p121) target = $region12
      $region11: #{tpu_custom_call.1} parent=5 // pred_region
        %s125 = ssub.s32 %s17, 1
      $region12: #{tpu_custom_call.1} parent=5 // pred_fallthru
        _
      %p126 = scmp.lt.s32.totalorder %s17, 2
      // Predicated region
      $region13: #{tpu_custom_call.1} parent=5 // pred_check
        %p127 = pneg %p126
      $region14: #{tpu_custom_call.1} parent=5 // pred_check_branch
        %129 = sbr.rel (%p127) target = $region16
      $region15: #{tpu_custom_call.1} parent=5 // pred_region
        // Predicated region
        $region17: #{tpu_custom_call.1} parent=15 // pred_check
          %p130 = pneg %p51
        $region18: #{tpu_custom_call.1} parent=15 // pred_check_branch
          %132 = sbr.rel (%p130) target = $region20
        $region19: #{tpu_custom_call.1} parent=15 // pred_region
          %s133 = sand.u32 %s41, 1
          %s134 = scalar_lea.sflag [#allocation3], %s133
          %s135 = sand.u32 %s41, 1
          %s136 = smul.addr %s135, 64
          %s137 = scalar_lea.vmem [#allocation2], %s136
          %s138 = smul.u32 8, %s24
          %140 = vsyncadd %s134, 0
          %s141 = smul.addr %s25, 2
          %s142 = smul.addr %s138, 2
          %s143 = sadd.s32 %s141, %s142
          %s144 = smul.addr %s143, 4
          %s145 = scalar_lea.hbm %s0, %s144
          %s146 = sshll.u32 %s145, 4
          %s147 = int_to_ptr.hbm [resolvable:$true] %s146
          %s148 = sshll.u32 %s137, 4
          %s149 = int_to_ptr.vmem [resolvable:$true] %s148
          %154 = dma.hbm_to_vmem [thread:$0]  %s147, 1024, %s149, %s134, 128, 128, 8
        $region20: #{tpu_custom_call.1} parent=15 // pred_fallthru
          _
        // Predicated region
        $region21: #{tpu_custom_call.1} parent=15 // pred_check
          %p155 = pneg %p77
        $region22: #{tpu_custom_call.1} parent=15 // pred_check_branch
          %157 = sbr.rel (%p155) target = $region24
        $region23: #{tpu_custom_call.1} parent=15 // pred_region
          %s158 = sand.u32 %s67, 1
          %s159 = scalar_lea.sflag [#allocation6], %s158
          %s160 = sand.u32 %s67, 1
          %s161 = smul.addr %s160, 16
          %s162 = scalar_lea.vmem [#allocation5], %s161
          %164 = vsyncadd %s159, 0
          %s165 = smul.addr %s24, 2
          %s166 = smul.addr %s165, 8
          %s167 = scalar_lea.hbm %s1, %s166
          %s169 = sshll.u32 %s167, 4
          %s170 = int_to_ptr.hbm [resolvable:$true] %s169
          %s171 = sshll.u32 %s162, 4
          %s172 = int_to_ptr.vmem [resolvable:$true] %s171
          %174 = dma.hbm_to_vmem [thread:$0]  %s170, 256, %s172, %s159
        $region24: #{tpu_custom_call.1} parent=15 // pred_fallthru
          _
      $region16: #{tpu_custom_call.1} parent=5 // pred_fallthru
        _
      %p175 = scmp.le.s32.totalorder 1, %s17
      %p176 = scmp.lt.s32.totalorder %s17, 3
      %p177 = pnand %p175, %p176
      %p178 = pneg %p177
      // Predicated region
      $region25: #{tpu_custom_call.1} parent=5 // pred_check
        _
      $region26: #{tpu_custom_call.1} parent=5 // pred_check_branch
        %180 = sbr.rel (%p177) target = $region28
      $region27: #{tpu_custom_call.1} parent=5 // pred_region
        %s181 = ssub.s32 %s17, 1
        %s182 = sand.u32 %s44, 1
        %s183 = scalar_lea.sflag [#allocation3], %s182
        %s184 = sand.u32 %s44, 1
        %s185 = smul.addr %s184, 64
        %s186 = scalar_lea.vmem [#allocation2], %s185
        // Predicated region
        $region29: #{tpu_custom_call.1} parent=27 // pred_check
          %p187 = pneg %p57
        $region30: #{tpu_custom_call.1} parent=27 // pred_check_branch
          %189 = sbr.rel (%p187) target = $region32
        $region31: #{tpu_custom_call.1} parent=27 // pred_region
          %191 = dma.done %s183, 1024
        $region32: #{tpu_custom_call.1} parent=27 // pred_fallthru
          _
        %s192 = sand.u32 %s70, 1
        %s193 = scalar_lea.sflag [#allocation6], %s192
        %s194 = sand.u32 %s70, 1
        %s195 = smul.addr %s194, 16
        %s196 = scalar_lea.vmem [#allocation5], %s195
        // Predicated region
        $region33: #{tpu_custom_call.1} parent=27 // pred_check
          %p197 = pneg %p83
        $region34: #{tpu_custom_call.1} parent=27 // pred_check_branch
          %199 = sbr.rel (%p197) target = $region36
        $region35: #{tpu_custom_call.1} parent=27 // pred_region
          %201 = dma.done %s193, 256
        $region36: #{tpu_custom_call.1} parent=27 // pred_fallthru
          _
        %s202 = sand.u32 %s44, 1
        %s203 = scalar_lea.sflag [#allocation3], %s202
        %s204 = sand.u32 %s44, 1
        %s205 = smul.addr %s204, 64
        %s206 = scalar_lea.vmem [#allocation2], %s205
        %p207 = pneg %p57
        %p208 = pneg %p54
        %s209 = sand.u32 %s70, 1
        %s210 = scalar_lea.sflag [#allocation6], %s209
        %s211 = sand.u32 %s70, 1
        %s212 = smul.addr %s211, 16
        %s213 = scalar_lea.vmem [#allocation5], %s212
        %p214 = pneg %p83
        %p215 = pneg %p80
        %p216 = pneg %p111
        %p217 = pneg %p108
        %s218 = sand.u32 %s98, 1
        %s219 = scalar_lea.sflag [#allocation4], %s218
        %s220 = sand.u32 %s98, 1
        %s221 = smul.addr %s220, 64
        %s222 = scalar_lea.vmem [#allocation7], %s221
        %s223 = smul.u32 8, %s26
        %s224 = smul.u32 8, %s26
        %v225 = vld [vmem:[%s186] sm:$0xff]
        %v226 = vld [vmem:[%s186 + $0x8] sm:$0xff]
        %v227 = vld [vmem:[%s186 + $0x10] sm:$0xff]
        %v228 = vld [vmem:[%s186 + $0x18] sm:$0xff]
        %v229 = vld [vmem:[%s186 + $0x20] sm:$0xff]
        %v230 = vld [vmem:[%s186 + $0x28] sm:$0xff]
        %v231 = vld [vmem:[%s186 + $0x30] sm:$0xff]
        %v232 = vld [vmem:[%s186 + $0x38] sm:$0xff]
        %v233 = vld [vmem:[%s196] sm:$0xff]
        %v234 = vld [vmem:[%s196 + $0x8] sm:$0xff]
        %v237 = vrot.slane %v234, 7
        %vm238 = vcmask 1040384
        %v239 = vsel %vm238, %v233, %v237
        %vm240 = vcmask 1041409
        %v241 = vsel %vm240, %v233, %v237
        %v242 = vrot.slane %v241, 1
        %vm243 = vcmask 1042434
        %v244 = vsel %vm243, %v233, %v237
        %v245 = vrot.slane %v244, 2
        %vm246 = vcmask 1043459
        %v247 = vsel %vm246, %v233, %v237
        %v248 = vrot.slane %v247, 3
        %vm249 = vcmask 1044484
        %v250 = vsel %vm249, %v233, %v237
        %v251 = vrot.slane %v250, 4
        %vm252 = vcmask 1045509
        %v253 = vsel %vm252, %v233, %v237
        %v254 = vrot.slane %v253, 5
        %vm255 = vcmask 1046534
        %v256 = vsel %vm255, %v233, %v237
        %v257 = vrot.slane %v256, 6
        %vm258 = vcmask 1046528
        %v259 = vsel %vm258, %v237, %v233
        %v260 = vrot.slane %v259, 7
        %v261 = vperm.slane %v239, 0
        %v262 = vperm.slane %v239, 1
        %v263 = vperm.slane %v242, 0
        %v264 = vperm.slane %v242, 1
        %v265 = vperm.slane %v245, 0
        %v266 = vperm.slane %v245, 1
        %v267 = vperm.slane %v248, 0
        %v268 = vperm.slane %v248, 1
        %v269 = vperm.slane %v251, 0
        %v270 = vperm.slane %v251, 1
        %v271 = vperm.slane %v254, 0
        %v272 = vperm.slane %v254, 1
        %v273 = vperm.slane %v257, 0
        %v274 = vperm.slane %v257, 1
        %v275 = vperm.slane %v260, 0
        %v276 = vperm.slane %v260, 1
        %v277 = vrot.slane %v262, 4
        %v278 = vrot.slane %v264, 4
        %v279 = vrot.slane %v266, 4
        %v280 = vrot.slane %v268, 4
        %v281 = vrot.slane %v270, 4
        %v282 = vrot.slane %v272, 4
        %v283 = vrot.slane %v274, 4
        %v284 = vrot.slane %v276, 4
        %vm285 = vcmask 1043456
        %v286 = vsel %vm285, %v261, %v277
        %v287 = vsel %vm285, %v263, %v278
        %v288 = vsel %vm285, %v265, %v279
        %v289 = vsel %vm285, %v267, %v280
        %v290 = vsel %vm285, %v269, %v281
        %v291 = vsel %vm285, %v271, %v282
        %v292 = vsel %vm285, %v273, %v283
        %v293 = vsel %vm285, %v275, %v284
        %v302 = vadd.f32 %v225, %v286
        %v303 = vadd.f32 %v226, %v287
        %v304 = vadd.f32 %v227, %v288
        %v305 = vadd.f32 %v228, %v289
        %v306 = vadd.f32 %v229, %v290
        %v307 = vadd.f32 %v230, %v291
        %v308 = vadd.f32 %v231, %v292
        %v309 = vadd.f32 %v232, %v293
        %vm310 = vcmask 998404
        %vm311 = vmor %vm310, %vm285
        %312 = vst.msk [vmem:[%s222] sm:$0xff] %vm311, %v302
        %313 = vst.msk [vmem:[%s222 + $0x8] sm:$0xff] %vm311, %v303
        %314 = vst.msk [vmem:[%s222 + $0x10] sm:$0xff] %vm311, %v304
        %315 = vst.msk [vmem:[%s222 + $0x18] sm:$0xff] %vm311, %v305
        %316 = vst.msk [vmem:[%s222 + $0x20] sm:$0xff] %vm311, %v306
        %317 = vst.msk [vmem:[%s222 + $0x28] sm:$0xff] %vm311, %v307
        %318 = vst.msk [vmem:[%s222 + $0x30] sm:$0xff] %vm311, %v308
        %319 = vst.msk [vmem:[%s222 + $0x38] sm:$0xff] %vm311, %v309
        %s320 = sand.u32 %s98, 1
        %s321 = scalar_lea.sflag [#allocation4], %s320
        %s322 = sand.u32 %s98, 1
        %s323 = smul.addr %s322, 64
        %s324 = scalar_lea.vmem [#allocation7], %s323
        // Predicated region
        $region37: #{tpu_custom_call.1} parent=27 // pred_check
          %p325 = pneg %p108
        $region38: #{tpu_custom_call.1} parent=27 // pred_check_branch
          %327 = sbr.rel (%p325) target = $region40
        $region39: #{tpu_custom_call.1} parent=27 // pred_region
          %s328 = smul.u32 8, %s26
          %330 = vsyncadd %s321, 0
          %s331 = smul.addr %s27, 2
          %s332 = smul.addr %s328, 2
          %s333 = sadd.s32 %s331, %s332
          %s334 = smul.addr %s333, 4
          %s335 = scalar_lea.hbm %s2, %s334
          %s336 = sshll.u32 %s324, 4
          %s337 = int_to_ptr.vmem [resolvable:$true] %s336
          %s338 = sshll.u32 %s335, 4
          %s339 = int_to_ptr.hbm [resolvable:$true] %s338
          %344 = dma.vmem_to_hbm [thread:$0]  %s337, 1024, %s339, %s321, 128, 128, 8
        $region40: #{tpu_custom_call.1} parent=27 // pred_fallthru
          _
      $region28: #{tpu_custom_call.1} parent=5 // pred_fallthru
        _
      %p345 = scmp.le.s32.totalorder 2, %s17
      // Predicated region
      $region41: #{tpu_custom_call.1} parent=5 // pred_check
        %p346 = pneg %p345
      $region42: #{tpu_custom_call.1} parent=5 // pred_check_branch
        %348 = sbr.rel (%p346) target = $region44
      $region43: #{tpu_custom_call.1} parent=5 // pred_region
        %s349 = ssub.s32 %s17, 2
        // Predicated region
        $region45: #{tpu_custom_call.1} parent=43 // pred_check
          %p350 = pneg %p114
        $region46: #{tpu_custom_call.1} parent=43 // pred_check_branch
          %352 = sbr.rel (%p350) target = $region48
        $region47: #{tpu_custom_call.1} parent=43 // pred_region
          %s353 = sand.u32 %s99, 1
          %s354 = scalar_lea.sflag [#allocation4], %s353
          %s355 = sand.u32 %s99, 1
          %s356 = smul.addr %s355, 64
          %s357 = scalar_lea.vmem [#allocation7], %s356
          %359 = dma.done %s354, 1024
        $region48: #{tpu_custom_call.1} parent=43 // pred_fallthru
          _
      $region44: #{tpu_custom_call.1} parent=5 // pred_fallthru
        _
    $region6: #{tpu_custom_call.1} parent=1 // loop_footer
      %s21 = sadd.s32 1, %s17
    $region7: #{tpu_custom_call.1} parent=1 // loop_footer_branch
      %16 = sbr.rel target = $region3
    $region8: #{tpu_custom_call.1} parent=1 // loop_exit
      _
    %360 = vsyncpa [#allocation3], 1
    %s361 = scalar_lea.sflag [#allocation3], 1
    %362 = vsyncpa %s361, 1
    %363 = vsyncpa [#allocation6], 1
    %s364 = scalar_lea.sflag [#allocation6], 1
    %365 = vsyncpa %s364, 1
    %366 = vsyncpa [#allocation4], 1
    %s367 = scalar_lea.sflag [#allocation4], 1
    %368 = vsyncpa %s367, 1

</llo_original>
